<compile_context>
chip_gen: v6e
topology: v6e:2x2x1
jax: 0.10.0
libtpu: 0.0.40
codegen_flags: <defaults>
</compile_context>

<pallas_src>
import functools

import jax
import jax.numpy as jnp
from jax.experimental import pallas as pl
from jax.experimental.pallas import tpu as pltpu


def early_kernel(t_ref, v_ref, a_ref, wt_ref, wv_ref, wa_ref, b_ref,
                 scores_ref):
    f32 = jnp.float32
    # mean-over-seq + Linear fused as MXU matmuls against 1/L-scaled,
    # L-replicated weight slabs. Accumulate in f32.
    acc = jnp.dot(t_ref[...], wt_ref[...], preferred_element_type=f32)
    acc = acc + jnp.dot(v_ref[...], wv_ref[...], preferred_element_type=f32)
    acc = acc + jnp.dot(a_ref[...], wa_ref[...], preferred_element_type=f32)
    # TODO(synk): training-mode nn.Dropout (stochastic mask) not implemented;
    # eval semantics (identity) are used.
    scores_ref[...] = jax.nn.sigmoid(acc + b_ref[...])


def _round_up(x, m):
    return ((x + m - 1) // m) * m


def _vmem_capacity_bytes():
    try:
        return int(pltpu.get_tpu_info().vmem_capacity_bytes)
    except Exception:
        return 64 << 20                      # conservative (v7x-sized) fallback


def _choose_tiling(batch, row_vmem_bytes, resident_vmem_bytes):
    """Pick (block_batch, vmem_limit_bytes) from padded VMEM footprints."""
    vmem_cap = _vmem_capacity_bytes()
    if vmem_cap >= (100 << 20):              # v5e / v6e: 128 MiB physical VMEM
        vmem_limit = 96 << 20
    else:                                    # v7x: 64 MiB per TensorCore
        vmem_limit = 48 << 20
    if batch <= 8:
        return batch, vmem_limit             # full-dim block is always legal

    budget = vmem_limit - resident_vmem_bytes - (4 << 20)   # pipeline slack
    budget = max(budget, 2 << 20)
    tb = budget // (2 * max(row_vmem_bytes, 1))              # double-buffered
    tb = min(tb, batch)
    # Keep >= 2 grid blocks so both v7x TensorCores get work ("parallel" axis).
    tb = min(tb, _round_up((batch + 1) // 2, 8))
    tb = max(8, (tb // 8) * 8)                               # sublane-aligned
    return tb, vmem_limit


@functools.partial(jax.jit, static_argnames=("threshold",))
def early_forward(text, visual, audio, labels, w, b, *, threshold=0.5):
    """Early-fusion forward pass.

    text:   [B, Lt, Dt]   visual: [B, Lv, Dv]   audio: [B, La, Da]
    labels: [B, C]
    w:      [C, Dt+Dv+Da]  (PyTorch nn.Linear layout)
    b:      [C]
    Returns (loss, predicted_labels, groundTruth_labels, predicted_scores).
    """
    B, Lt, Dt = text.shape
    _, Lv, Dv = visual.shape
    _, La, Da = audio.shape
    C = w.shape[0]
    C_pad = _round_up(C, 128)                 # lane-dense output slab
    Kt, Kv, Ka = Lt * Dt, Lv * Dv, La * Da

    # Lane-dense, contiguous [B, L*D] views (free reshape; keep storage dtype).
    t2 = text.reshape(B, Kt)
    v2 = visual.reshape(B, Kv)
    a2 = audio.reshape(B, Ka)

    # Per-modality weight slabs: W[:, slice].T replicated L times along the
    # contraction dim, pre-scaled by 1/L, class dim zero-padded to C_pad, cast
    # to the modality's storage dtype so the MXU operands match.
    def rep_pad(w_slice, L, dtype):
        wm = jnp.transpose(w_slice.astype(jnp.float32)) * (1.0 / L)   # [D, C]
        wm = jnp.tile(wm, (L, 1))                                     # [L*D, C]
        wm = jnp.zeros((wm.shape[0], C_pad), jnp.float32).at[:, :C].set(wm)
        return wm.astype(dtype)

    wt = rep_pad(w[:, :Dt], Lt, t2.dtype)
    wv = rep_pad(w[:, Dt:Dt + Dv], Lv, v2.dtype)
    wa = rep_pad(w[:, Dt + Dv:], La, a2.dtype)
    b_pad = jnp.zeros((1, C_pad), jnp.float32).at[:, :C].set(
        b.astype(jnp.float32)[None, :])

    # --- VMEM-aware batch tiling (lane/sublane padded accounting) ---
    row_vmem = (_round_up(Kt, 128) * t2.dtype.itemsize
                + _round_up(Kv, 128) * v2.dtype.itemsize
                + _round_up(Ka, 128) * a2.dtype.itemsize
                + C_pad * 4)                                   # scores out row
    resident = 2 * (_round_up(Kt, 8) * C_pad * wt.dtype.itemsize
                    + _round_up(Kv, 8) * C_pad * wv.dtype.itemsize
                    + _round_up(Ka, 8) * C_pad * wa.dtype.itemsize
                    + 8 * C_pad * 4)                           # weights + bias
    TB, vmem_limit = _choose_tiling(B, row_vmem, resident)
    num_blocks = pl.cdiv(B, TB)

    grid_spec = pltpu.PrefetchScalarGridSpec(
        num_scalar_prefetch=0,
        grid=(num_blocks,),
        in_specs=[
            pl.BlockSpec((TB, Kt), lambda i: (i, 0)),
            pl.BlockSpec((TB, Kv), lambda i: (i, 0)),
            pl.BlockSpec((TB, Ka), lambda i: (i, 0)),
            pl.BlockSpec((Kt, C_pad), lambda i: (0, 0)),   # broadcast weights
            pl.BlockSpec((Kv, C_pad), lambda i: (0, 0)),
            pl.BlockSpec((Ka, C_pad), lambda i: (0, 0)),
            pl.BlockSpec((1, C_pad), lambda i: (0, 0)),    # broadcast bias
        ],
        out_specs=pl.BlockSpec((TB, C_pad), lambda i: (i, 0)),
    )

    scores_pad = pl.pallas_call(
        early_kernel,
        out_shape=jax.ShapeDtypeStruct((B, C_pad), jnp.float32),
        grid_spec=grid_spec,
        compiler_params=pltpu.CompilerParams(
            dimension_semantics=("parallel",),
            vmem_limit_bytes=vmem_limit),
    )(t2, v2, a2, wt, wv, wa, b_pad)

    # Tiny [B, C] epilogue (fused by XLA): slice, binarize, BCE mean loss
    # (torch BCELoss semantics with the -100 log clamp).
    scores = scores_pad[:, :C]
    pred = (scores > jnp.float32(threshold)).astype(jnp.float32)
    y = labels.astype(jnp.float32)
    log_p = jnp.maximum(jnp.log(scores), -100.0)
    log_1mp = jnp.maximum(jnp.log(1.0 - scores), -100.0)
    loss = jnp.mean(-(y * log_p + (1.0 - y) * log_1mp))
    return loss, pred, y, scores


if __name__ == "__main__":
    # Small shapes consistent with the module's forward.
    B, L = 2, 8
    Dt, Dv, Da = 32, 16, 16
    C = 4
    threshold = 0.5

    key = jax.random.PRNGKey(0)
    k_t, k_v, k_a, k_w, k_b, k_y = jax.random.split(key, 6)

    text = jax.random.normal(k_t, (B, L, Dt), dtype=jnp.float32)
    visual = jax.random.normal(k_v, (B, L, Dv), dtype=jnp.float32)
    audio = jax.random.normal(k_a, (B, L, Da), dtype=jnp.float32)
    labels = (jax.random.uniform(k_y, (B, C)) > 0.5).astype(jnp.float32)

    # Deterministic classifier params (nn.Linear(Dt+Dv+Da, C) shapes).
    Dtot = Dt + Dv + Da
    bound = 1.0 / (Dtot ** 0.5)
    w = jax.random.uniform(k_w, (C, Dtot), minval=-bound, maxval=bound,
                           dtype=jnp.float32)
    b = jax.random.uniform(k_b, (C,), minval=-bound, maxval=bound,
                           dtype=jnp.float32)

    loss, pred_labels, gt_labels, pred_scores = early_forward(
        text, visual, audio, labels, w, b, threshold=threshold)
    jax.block_until_ready((loss, pred_labels, gt_labels, pred_scores))

    # Cross-check against a pure-JAX reference (tolerance-based: the MXU
    # mean-as-matmul reformulation changes f32 accumulation order).
    avg_t = jnp.mean(text, axis=1)
    avg_v = jnp.mean(visual, axis=1)
    avg_a = jnp.mean(audio, axis=1)
    concat = jnp.concatenate([avg_t, avg_v, avg_a], axis=1)
    ref_scores = jax.nn.sigmoid(concat @ w.T + b)
    ref_loss = jnp.mean(-(labels * jnp.maximum(jnp.log(ref_scores), -100.0)
                          + (1 - labels) * jnp.maximum(jnp.log(1 - ref_scores),
                                                       -100.0)))
    assert jnp.allclose(pred_scores, ref_scores, atol=1e-4), "scores mismatch"
    assert jnp.allclose(loss, ref_loss, atol=1e-4), "loss mismatch"
    assert jnp.all(gt_labels == labels), "labels passthrough mismatch"
    assert jnp.all(
        pred_labels == (pred_scores > threshold).astype(jnp.float32)), \
        "prediction/threshold mismatch"

    print("KERNEL_OK")
</pallas_src>

<mosaic_0001>
module attributes {stable_mosaic.version = 11 : i64} {
  func.func @early_kernel(%arg0: i32, %arg1: memref<2x256xf32, #tpu.memory_space<vmem>>, %arg2: memref<2x128xf32, #tpu.memory_space<vmem>>, %arg3: memref<2x128xf32, #tpu.memory_space<vmem>>, %arg4: memref<256x128xf32, #tpu.memory_space<vmem>>, %arg5: memref<128x128xf32, #tpu.memory_space<vmem>>, %arg6: memref<128x128xf32, #tpu.memory_space<vmem>>, %arg7: memref<1x128xf32, #tpu.memory_space<vmem>>, %arg8: memref<2x128xf32, #tpu.memory_space<vmem>>) attributes {dimension_semantics = [#tpu.dimension_semantics<parallel>], iteration_bounds = array<i64: 1>, scalar_prefetch = 0 : i64, scratch_operands = 0 : i64, tpu.core_type = #tpu.core_type<tc>, window_params = [{transform_indices = @transform_0, window_bounds = array<i64: 2, 256>}, {transform_indices = @transform_1, window_bounds = array<i64: 2, 128>}, {transform_indices = @transform_2, window_bounds = array<i64: 2, 128>}, {pipeline_mode = #tpu.pipeline_mode<synchronous>, transform_indices = @transform_3, window_bounds = array<i64: 256, 128>}, {pipeline_mode = #tpu.pipeline_mode<synchronous>, transform_indices = @transform_4, window_bounds = array<i64: 128, 128>}, {pipeline_mode = #tpu.pipeline_mode<synchronous>, transform_indices = @transform_5, window_bounds = array<i64: 128, 128>}, {pipeline_mode = #tpu.pipeline_mode<synchronous>, transform_indices = @transform_6, window_bounds = array<i64: 1, 128>}, {transform_indices = @transform_7, window_bounds = array<i64: 2, 128>}]} {
    %c0 = arith.constant 0 : index
    %c0_0 = arith.constant 0 : index
    %0 = vector.load %arg1[%c0, %c0_0] : memref<2x256xf32, #tpu.memory_space<vmem>>, vector<2x256xf32>
    %c0_1 = arith.constant 0 : index
    %c0_2 = arith.constant 0 : index
    %1 = vector.load %arg4[%c0_1, %c0_2] : memref<256x128xf32, #tpu.memory_space<vmem>>, vector<256x128xf32>
    %cst = arith.constant dense<0.000000e+00> : vector<2x128xf32>
    %2 = tpu.matmul %0, %1, %cst {dimension_numbers = #tpu.dot_dimension_numbers<[1], [0], [0], [1], [0, 0, 1, 1], [], []>} : vector<2x256xf32>, vector<256x128xf32>, vector<2x128xf32> -> vector<2x128xf32>
    %c0_3 = arith.constant 0 : index
    %c0_4 = arith.constant 0 : index
    %3 = vector.load %arg2[%c0_3, %c0_4] : memref<2x128xf32, #tpu.memory_space<vmem>>, vector<2x128xf32>
    %c0_5 = arith.constant 0 : index
    %c0_6 = arith.constant 0 : index
    %4 = vector.load %arg5[%c0_5, %c0_6] : memref<128x128xf32, #tpu.memory_space<vmem>>, vector<128x128xf32>
    %cst_7 = arith.constant dense<0.000000e+00> : vector<2x128xf32>
    %5 = tpu.matmul %3, %4, %cst_7 {dimension_numbers = #tpu.dot_dimension_numbers<[1], [0], [0], [1], [0, 0, 1, 1], [], []>} : vector<2x128xf32>, vector<128x128xf32>, vector<2x128xf32> -> vector<2x128xf32>
    %6 = arith.addf %2, %5 : vector<2x128xf32>
    %c0_8 = arith.constant 0 : index
    %c0_9 = arith.constant 0 : index
    %7 = vector.load %arg3[%c0_8, %c0_9] : memref<2x128xf32, #tpu.memory_space<vmem>>, vector<2x128xf32>
    %c0_10 = arith.constant 0 : index
    %c0_11 = arith.constant 0 : index
    %8 = vector.load %arg6[%c0_10, %c0_11] : memref<128x128xf32, #tpu.memory_space<vmem>>, vector<128x128xf32>
    %cst_12 = arith.constant dense<0.000000e+00> : vector<2x128xf32>
    %9 = tpu.matmul %7, %8, %cst_12 {dimension_numbers = #tpu.dot_dimension_numbers<[1], [0], [0], [1], [0, 0, 1, 1], [], []>} : vector<2x128xf32>, vector<128x128xf32>, vector<2x128xf32> -> vector<2x128xf32>
    %10 = arith.addf %6, %9 : vector<2x128xf32>
    %c0_13 = arith.constant 0 : index
    %c0_14 = arith.constant 0 : index
    %11 = vector.load %arg7[%c0_13, %c0_14] : memref<1x128xf32, #tpu.memory_space<vmem>>, vector<1x128xf32>
    %12 = vector.broadcast %11 : vector<1x128xf32> to vector<2x128xf32>
    %13 = arith.addf %10, %12 : vector<2x128xf32>
    %14 = arith.negf %13 : vector<2x128xf32>
    %15 = math.exp %14 : vector<2x128xf32>
    %cst_15 = arith.constant 1.000000e+00 : f32
    %16 = vector.broadcast %cst_15 : f32 to vector<2x128xf32>
    %17 = arith.addf %16, %15 : vector<2x128xf32>
    %18 = arith.divf %16, %17 : vector<2x128xf32>
    %c0_16 = arith.constant 0 : index
    %c0_17 = arith.constant 0 : index
    %19 = vector.load %arg8[%c0_16, %c0_17] : memref<2x128xf32, #tpu.memory_space<vmem>>, vector<2x128xf32>
    tpu.vector_store %arg8[%c0_16, %c0_17], %18 {strides = array<i32>} : memref<2x128xf32, #tpu.memory_space<vmem>>, vector<2x128xf32>,
    return
  }
  func.func @transform_0(%arg0: i32) -> (i32, i32) {
    %c0_i32 = arith.constant 0 : i32
    %c0_i32_0 = arith.constant 0 : i32
    return %arg0, %c0_i32 : i32, i32
  }
  func.func @transform_1(%arg0: i32) -> (i32, i32) {
    %c0_i32 = arith.constant 0 : i32
    %c0_i32_0 = arith.constant 0 : i32
    return %arg0, %c0_i32 : i32, i32
  }
  func.func @transform_2(%arg0: i32) -> (i32, i32) {
    %c0_i32 = arith.constant 0 : i32
    %c0_i32_0 = arith.constant 0 : i32
    return %arg0, %c0_i32 : i32, i32
  }
  func.func @transform_3(%arg0: i32) -> (i32, i32) {
    %c0_i32 = arith.constant 0 : i32
    %c0_i32_0 = arith.constant 0 : i32
    %c0_i32_1 = arith.constant 0 : i32
    return %c0_i32, %c0_i32_0 : i32, i32
  }
  func.func @transform_4(%arg0: i32) -> (i32, i32) {
    %c0_i32 = arith.constant 0 : i32
    %c0_i32_0 = arith.constant 0 : i32
    %c0_i32_1 = arith.constant 0 : i32
    return %c0_i32, %c0_i32_0 : i32, i32
  }
  func.func @transform_5(%arg0: i32) -> (i32, i32) {
    %c0_i32 = arith.constant 0 : i32
    %c0_i32_0 = arith.constant 0 : i32
    %c0_i32_1 = arith.constant 0 : i32
    return %c0_i32, %c0_i32_0 : i32, i32
  }
  func.func @transform_6(%arg0: i32) -> (i32, i32) {
    %c0_i32 = arith.constant 0 : i32
    %c0_i32_0 = arith.constant 0 : i32
    %c0_i32_1 = arith.constant 0 : i32
    return %c0_i32, %c0_i32_0 : i32, i32
  }
  func.func @transform_7(%arg0: i32) -> (i32, i32) {
    %c0_i32 = arith.constant 0 : i32
    %c0_i32_0 = arith.constant 0 : i32
    return %arg0, %c0_i32 : i32, i32
  }
}

</mosaic_0001>

<llo_original>
// kernel: early_forward.1
$region0: #{early_forward.1}
  #allocation0 [shape = 'u32[]', space=smem, size = 0x4, offset = 0x4, fixed_abs, tag = 'smem constant byte address 0x4 - core index']
  #allocation1 [shape = 'u32[144,128]{1,0:T(1,128)}', space=vmem, size = 0x12000, scoped, tag = 'internal scratch']
  %s0 = inlined_call_operand.vmem [shape: f32[2,256], index: 0, kind: input, shape index: {}]
  %s1 = inlined_call_operand.vmem [shape: f32[2,128], index: 1, kind: input, shape index: {}]
  %s2 = inlined_call_operand.vmem [shape: f32[2,128], index: 2, kind: input, shape index: {}]
  %s3 = inlined_call_operand.vmem [shape: f32[256,128], index: 3, kind: input, shape index: {}]
  %s4 = inlined_call_operand.vmem [shape: f32[128,128], index: 4, kind: input, shape index: {}]
  %s5 = inlined_call_operand.vmem [shape: f32[128,128], index: 5, kind: input, shape index: {}]
  %s6 = inlined_call_operand.vmem [shape: f32[1,128], index: 6, kind: input, shape index: {}]
  %s7 = inlined_call_operand.vmem [shape: f32[2,128], index: 7, kind: output, shape index: {}]
  %s8 = sld [smem:[#allocation0]]
  $region38: #{early_forward.1} parent=0
    _
  %s10 = ssub.s32 1, %s8
  %s11 = scalar_select 0, %s10, %s8
  // Predicated region
  $region2: #{early_forward.1} parent=0 // pred_check
    _
  $region3: #{early_forward.1} parent=0 // pred_check_branch
    %13 = sbr.rel (0) target = $region5
  $region4: #{early_forward.1} parent=0 // pred_region
    _
  $region5: #{early_forward.1} parent=0 // pred_fallthru
    _
  // Predicated region
  $region6: #{early_forward.1} parent=0 // pred_check
    _
  $region7: #{early_forward.1} parent=0 // pred_check_branch
    %15 = sbr.rel (0) target = $region9
  $region8: #{early_forward.1} parent=0 // pred_region
    _
  $region9: #{early_forward.1} parent=0 // pred_fallthru
    _
  // Predicated region
  $region10: #{early_forward.1} parent=0 // pred_check
    _
  $region11: #{early_forward.1} parent=0 // pred_check_branch
    %17 = sbr.rel (0) target = $region13
  $region12: #{early_forward.1} parent=0 // pred_region
    _
  $region13: #{early_forward.1} parent=0 // pred_fallthru
    _
  // Predicated region
  $region14: #{early_forward.1} parent=0 // pred_check
    _
  $region15: #{early_forward.1} parent=0 // pred_check_branch
    %19 = sbr.rel (0) target = $region17
  $region16: #{early_forward.1} parent=0 // pred_region
    _
  $region17: #{early_forward.1} parent=0 // pred_fallthru
    _
  // Predicated region
  $region18: #{early_forward.1} parent=0 // pred_check
    _
  $region19: #{early_forward.1} parent=0 // pred_check_branch
    %21 = sbr.rel (0) target = $region21
  $region20: #{early_forward.1} parent=0 // pred_region
    _
  $region21: #{early_forward.1} parent=0 // pred_fallthru
    _
  // Predicated region
  $region22: #{early_forward.1} parent=0 // pred_check
    _
  $region23: #{early_forward.1} parent=0 // pred_check_branch
    %23 = sbr.rel (0) target = $region25
  $region24: #{early_forward.1} parent=0 // pred_region
    _
  $region25: #{early_forward.1} parent=0 // pred_fallthru
    _
  // Predicated region
  $region26: #{early_forward.1} parent=0 // pred_check
    _
  $region27: #{early_forward.1} parent=0 // pred_check_branch
    %25 = sbr.rel (0) target = $region29
  $region28: #{early_forward.1} parent=0 // pred_region
    _
  $region29: #{early_forward.1} parent=0 // pred_fallthru
    _
  %v26 = vld [vmem:[%s0] sm:$0xf]
  %v27 = vld [vmem:[%s3] sm:$0xff]
  %v28 = vld [vmem:[%s3 + $0x8] sm:$0xff]
  %v29 = vld [vmem:[%s3 + $0x10] sm:$0xff]
  %v30 = vld [vmem:[%s3 + $0x18] sm:$0xff]
  %v31 = vld [vmem:[%s3 + $0x20] sm:$0xff]
  %v32 = vld [vmem:[%s3 + $0x28] sm:$0xff]
  %v33 = vld [vmem:[%s3 + $0x30] sm:$0xff]
  %v34 = vld [vmem:[%s3 + $0x38] sm:$0xff]
  %v35 = vld [vmem:[%s3 + $0x40] sm:$0xff]
  %v36 = vld [vmem:[%s3 + $0x48] sm:$0xff]
  %v37 = vld [vmem:[%s3 + $0x50] sm:$0xff]
  %v38 = vld [vmem:[%s3 + $0x58] sm:$0xff]
  %v39 = vld [vmem:[%s3 + $0x60] sm:$0xff]
  %v40 = vld [vmem:[%s3 + $0x68] sm:$0xff]
  %v41 = vld [vmem:[%s3 + $0x70] sm:$0xff]
  %v42 = vld [vmem:[%s3 + $0x78] sm:$0xff]
  %v43 = vld [vmem:[%s3 + $0x80] sm:$0xff]
  %v44 = vld [vmem:[%s3 + $0x88] sm:$0xff]
  %v45 = vld [vmem:[%s3 + $0x90] sm:$0xff]
  %v46 = vld [vmem:[%s3 + $0x98] sm:$0xff]
  %v47 = vld [vmem:[%s3 + $0xa0] sm:$0xff]
  %v48 = vld [vmem:[%s3 + $0xa8] sm:$0xff]
  %v49 = vld [vmem:[%s3 + $0xb0] sm:$0xff]
  %v50 = vld [vmem:[%s3 + $0xb8] sm:$0xff]
  %v51 = vld [vmem:[%s3 + $0xc0] sm:$0xff]
  %v52 = vld [vmem:[%s3 + $0xc8] sm:$0xff]
  %v53 = vld [vmem:[%s3 + $0xd0] sm:$0xff]
  %v54 = vld [vmem:[%s3 + $0xd8] sm:$0xff]
  %v55 = vld [vmem:[%s3 + $0xe0] sm:$0xff]
  %v56 = vld [vmem:[%s3 + $0xe8] sm:$0xff]
  %v57 = vld [vmem:[%s3 + $0xf0] sm:$0xff]
  %v58 = vld [vmem:[%s3 + $0xf8] sm:$0xff]
  %v59 = vld [vmem:[%s1] sm:$0x3]
  %v60 = vld [vmem:[%s4] sm:$0xff]
  %v61 = vld [vmem:[%s4 + $0x8] sm:$0xff]
  %v62 = vld [vmem:[%s4 + $0x10] sm:$0xff]
  %v63 = vld [vmem:[%s4 + $0x18] sm:$0xff]
  %v64 = vld [vmem:[%s4 + $0x20] sm:$0xff]
  %v65 = vld [vmem:[%s4 + $0x28] sm:$0xff]
  %v66 = vld [vmem:[%s4 + $0x30] sm:$0xff]
  %v67 = vld [vmem:[%s4 + $0x38] sm:$0xff]
  %v68 = vld [vmem:[%s4 + $0x40] sm:$0xff]
  %v69 = vld [vmem:[%s4 + $0x48] sm:$0xff]
  %v70 = vld [vmem:[%s4 + $0x50] sm:$0xff]
  %v71 = vld [vmem:[%s4 + $0x58] sm:$0xff]
  %v72 = vld [vmem:[%s4 + $0x60] sm:$0xff]
  %v73 = vld [vmem:[%s4 + $0x68] sm:$0xff]
  %v74 = vld [vmem:[%s4 + $0x70] sm:$0xff]
  %v75 = vld [vmem:[%s4 + $0x78] sm:$0xff]
  %76 = vmatprep.subr.mxu0 0.0
  %77 = vmatpush1.msra.mxu0 %v75
  %78 = vmatprep.subr.mxu0 0.0
  %79 = vmatpush1.msra.mxu0 %v74
  %80 = vmatprep.subr.mxu0 0.0
  %81 = vmatpush1.msra.mxu0 %v73
  %82 = vmatprep.subr.mxu0 0.0
  %83 = vmatpush1.msra.mxu0 %v72
  %84 = vmatprep.subr.mxu0 0.0
  %85 = vmatpush1.msra.mxu0 %v71
  %86 = vmatprep.subr.mxu0 0.0
  %87 = vmatpush1.msra.mxu0 %v70
  %88 = vmatprep.subr.mxu0 0.0
  %89 = vmatpush1.msra.mxu0 %v69
  %90 = vmatprep.subr.mxu0 0.0
  %91 = vmatpush1.msra.mxu0 %v68
  %92 = vmatprep.subr.mxu0 0.0
  %93 = vmatpush1.msra.mxu0 %v67
  %94 = vmatprep.subr.mxu0 0.0
  %95 = vmatpush1.msra.mxu0 %v66
  %96 = vmatprep.subr.mxu0 0.0
  %97 = vmatpush1.msra.mxu0 %v65
  %98 = vmatprep.subr.mxu0 0.0
  %99 = vmatpush1.msra.mxu0 %v64
  %100 = vmatprep.subr.mxu0 0.0
  %101 = vmatpush1.msra.mxu0 %v63
  %102 = vmatprep.subr.mxu0 0.0
  %103 = vmatpush1.msra.mxu0 %v62
  %104 = vmatprep.subr.mxu0 0.0
  %105 = vmatpush1.msra.mxu0 %v61
  %106 = vmatprep.subr.mxu0 0.0
  %107 = vmatpush1.msra.mxu0 %v60
  %108 = vmatprep.subr.mxu0 0.0
  %109 = vmatpush2.msra.mxu0 0.0
  %110 = vmatprep.subr.mxu0 0.0
  %111 = vmatpush2.msra.mxu0 0.0
  %112 = vmatprep.subr.mxu0 0.0
  %113 = vmatpush2.msra.mxu0 0.0
  %114 = vmatprep.subr.mxu0 0.0
  %115 = vmatpush2.msra.mxu0 0.0
  %116 = vmatprep.subr.mxu0 0.0
  %117 = vmatpush2.msra.mxu0 0.0
  %118 = vmatprep.subr.mxu0 0.0
  %119 = vmatpush2.msra.mxu0 0.0
  %120 = vmatprep.subr.mxu0 0.0
  %121 = vmatpush2.msra.mxu0 0.0
  %122 = vmatprep.subr.mxu0 0.0
  %123 = vmatpush2.msra.mxu0 0.0
  %124 = vmatprep.subr.mxu0 0.0
  %125 = vmatpush2.msra.mxu0 0.0
  %126 = vmatprep.subr.mxu0 0.0
  %127 = vmatpush2.msra.mxu0 0.0
  %128 = vmatprep.subr.mxu0 0.0
  %129 = vmatpush2.msra.mxu0 0.0
  %130 = vmatprep.subr.mxu0 0.0
  %131 = vmatpush2.msra.mxu0 0.0
  %132 = vmatprep.subr.mxu0 0.0
  %133 = vmatpush2.msra.mxu0 0.0
  %134 = vmatprep.subr.mxu0 0.0
  %135 = vmatpush2.msra.mxu0 0.0
  %136 = vmatprep.subr.mxu0 0.0
  %137 = vmatpush2.msra.mxu0 0.0
  %138 = vmatprep.subr.mxu0 0.0
  %139 = vmatpush2.msra.mxu0 0.0
  %140 = vmatprep.mubr.f32.mxu0 0.0
  %141 = vmatmul.mubr.f32.gmra.mxu0 %v59
  %v142 = vpop.f32.mrf.mxu0
  %v143 = vadd.f32 0.0, %v142
  %v144 = vpop.f32.mrf.mxu0
  %145 = vdwg.mxu0
  %v148 = vunpack.c.l.s4 1983009808
  %v149 = vunpack.c.0.s8 %v148
  %v150 = vlaneseq
  %v151 = vshrl.u32 %v150, 7
  %v152 = vsub.s32 %v149, %v151
  %v153 = vrot.slane %v26, %v152
  %v154 = vcombine.high %v153, %v153
  %157 = vmatprep.subr.mxu0 0.0
  %158 = vmatpush1.msra.mxu0 %v42
  %159 = vmatprep.subr.mxu0 0.0
  %160 = vmatpush1.msra.mxu0 %v41
  %161 = vmatprep.subr.mxu0 0.0
  %162 = vmatpush1.msra.mxu0 %v40
  %163 = vmatprep.subr.mxu0 0.0
  %164 = vmatpush1.msra.mxu0 %v39
  %165 = vmatprep.subr.mxu0 0.0
  %166 = vmatpush1.msra.mxu0 %v38
  %167 = vmatprep.subr.mxu0 0.0
  %168 = vmatpush1.msra.mxu0 %v37
  %169 = vmatprep.subr.mxu0 0.0
  %170 = vmatpush1.msra.mxu0 %v36
  %171 = vmatprep.subr.mxu0 0.0
  %172 = vmatpush1.msra.mxu0 %v35
  %173 = vmatprep.subr.mxu0 0.0
  %174 = vmatpush1.msra.mxu0 %v34
  %175 = vmatprep.subr.mxu0 0.0
  %176 = vmatpush1.msra.mxu0 %v33
  %177 = vmatprep.subr.mxu0 0.0
  %178 = vmatpush1.msra.mxu0 %v32
  %179 = vmatprep.subr.mxu0 0.0
  %180 = vmatpush1.msra.mxu0 %v31
  %181 = vmatprep.subr.mxu0 0.0
  %182 = vmatpush1.msra.mxu0 %v30
  %183 = vmatprep.subr.mxu0 0.0
  %184 = vmatpush1.msra.mxu0 %v29
  %185 = vmatprep.subr.mxu0 0.0
  %186 = vmatpush1.msra.mxu0 %v28
  %187 = vmatprep.subr.mxu0 0.0
  %188 = vmatpush1.msra.mxu0 %v27
  %189 = vmatprep.subr.mxu0 0.0
  %190 = vmatpush2.msra.mxu0 %v58
  %191 = vmatprep.subr.mxu0 0.0
  %192 = vmatpush2.msra.mxu0 %v57
  %193 = vmatprep.subr.mxu0 0.0
  %194 = vmatpush2.msra.mxu0 %v56
  %195 = vmatprep.subr.mxu0 0.0
  %196 = vmatpush2.msra.mxu0 %v55
  %197 = vmatprep.subr.mxu0 0.0
  %198 = vmatpush2.msra.mxu0 %v54
  %199 = vmatprep.subr.mxu0 0.0
  %200 = vmatpush2.msra.mxu0 %v53
  %201 = vmatprep.subr.mxu0 0.0
  %202 = vmatpush2.msra.mxu0 %v52
  %203 = vmatprep.subr.mxu0 0.0
  %204 = vmatpush2.msra.mxu0 %v51
  %205 = vmatprep.subr.mxu0 0.0
  %206 = vmatpush2.msra.mxu0 %v50
  %207 = vmatprep.subr.mxu0 0.0
  %208 = vmatpush2.msra.mxu0 %v49
  %209 = vmatprep.subr.mxu0 0.0
  %210 = vmatpush2.msra.mxu0 %v48
  %211 = vmatprep.subr.mxu0 0.0
  %212 = vmatpush2.msra.mxu0 %v47
  %213 = vmatprep.subr.mxu0 0.0
  %214 = vmatpush2.msra.mxu0 %v46
  %215 = vmatprep.subr.mxu0 0.0
  %216 = vmatpush2.msra.mxu0 %v45
  %217 = vmatprep.subr.mxu0 0.0
  %218 = vmatpush2.msra.mxu0 %v44
  %219 = vmatprep.subr.mxu0 0.0
  %220 = vmatpush2.msra.mxu0 %v43
  %221 = vmatprep.mubr.f32.mxu0 %v154
  %222 = vmatmul.mubr.f32.gmra.mxu0 %v153
  %v223 = vpop.f32.mrf.mxu0
  %v224 = vadd.f32 %v143, %v223
  %v225 = vpop.f32.mrf.mxu0
  %226 = vdwg.mxu0
  %v227 = vld [vmem:[%s2] sm:$0x3]
  %v228 = vld [vmem:[%s5] sm:$0xff]
  %v229 = vld [vmem:[%s5 + $0x8] sm:$0xff]
  %v230 = vld [vmem:[%s5 + $0x10] sm:$0xff]
  %v231 = vld [vmem:[%s5 + $0x18] sm:$0xff]
  %v232 = vld [vmem:[%s5 + $0x20] sm:$0xff]
  %v233 = vld [vmem:[%s5 + $0x28] sm:$0xff]
  %v234 = vld [vmem:[%s5 + $0x30] sm:$0xff]
  %v235 = vld [vmem:[%s5 + $0x38] sm:$0xff]
  %v236 = vld [vmem:[%s5 + $0x40] sm:$0xff]
  %v237 = vld [vmem:[%s5 + $0x48] sm:$0xff]
  %v238 = vld [vmem:[%s5 + $0x50] sm:$0xff]
  %v239 = vld [vmem:[%s5 + $0x58] sm:$0xff]
  %v240 = vld [vmem:[%s5 + $0x60] sm:$0xff]
  %v241 = vld [vmem:[%s5 + $0x68] sm:$0xff]
  %v242 = vld [vmem:[%s5 + $0x70] sm:$0xff]
  %v243 = vld [vmem:[%s5 + $0x78] sm:$0xff]
  %244 = vmatprep.subr.mxu0 0.0
  %245 = vmatpush1.msra.mxu0 %v243
  %246 = vmatprep.subr.mxu0 0.0
  %247 = vmatpush1.msra.mxu0 %v242
  %248 = vmatprep.subr.mxu0 0.0
  %249 = vmatpush1.msra.mxu0 %v241
  %250 = vmatprep.subr.mxu0 0.0
  %251 = vmatpush1.msra.mxu0 %v240
  %252 = vmatprep.subr.mxu0 0.0
  %253 = vmatpush1.msra.mxu0 %v239
  %254 = vmatprep.subr.mxu0 0.0
  %255 = vmatpush1.msra.mxu0 %v238
  %256 = vmatprep.subr.mxu0 0.0
  %257 = vmatpush1.msra.mxu0 %v237
  %258 = vmatprep.subr.mxu0 0.0
  %259 = vmatpush1.msra.mxu0 %v236
  %260 = vmatprep.subr.mxu0 0.0
  %261 = vmatpush1.msra.mxu0 %v235
  %262 = vmatprep.subr.mxu0 0.0
  %263 = vmatpush1.msra.mxu0 %v234
  %264 = vmatprep.subr.mxu0 0.0
  %265 = vmatpush1.msra.mxu0 %v233
  %266 = vmatprep.subr.mxu0 0.0
  %267 = vmatpush1.msra.mxu0 %v232
  %268 = vmatprep.subr.mxu0 0.0
  %269 = vmatpush1.msra.mxu0 %v231
  %270 = vmatprep.subr.mxu0 0.0
  %271 = vmatpush1.msra.mxu0 %v230
  %272 = vmatprep.subr.mxu0 0.0
  %273 = vmatpush1.msra.mxu0 %v229
  %274 = vmatprep.subr.mxu0 0.0
  %275 = vmatpush1.msra.mxu0 %v228
  %276 = vmatprep.subr.mxu0 0.0
  %277 = vmatpush2.msra.mxu0 0.0
  %278 = vmatprep.subr.mxu0 0.0
  %279 = vmatpush2.msra.mxu0 0.0
  %280 = vmatprep.subr.mxu0 0.0
  %281 = vmatpush2.msra.mxu0 0.0
  %282 = vmatprep.subr.mxu0 0.0
  %283 = vmatpush2.msra.mxu0 0.0
  %284 = vmatprep.subr.mxu0 0.0
  %285 = vmatpush2.msra.mxu0 0.0
  %286 = vmatprep.subr.mxu0 0.0
  %287 = vmatpush2.msra.mxu0 0.0
  %288 = vmatprep.subr.mxu0 0.0
  %289 = vmatpush2.msra.mxu0 0.0
  %290 = vmatprep.subr.mxu0 0.0
  %291 = vmatpush2.msra.mxu0 0.0
  %292 = vmatprep.subr.mxu0 0.0
  %293 = vmatpush2.msra.mxu0 0.0
  %294 = vmatprep.subr.mxu0 0.0
  %295 = vmatpush2.msra.mxu0 0.0
  %296 = vmatprep.subr.mxu0 0.0
  %297 = vmatpush2.msra.mxu0 0.0
  %298 = vmatprep.subr.mxu0 0.0
  %299 = vmatpush2.msra.mxu0 0.0
  %300 = vmatprep.subr.mxu0 0.0
  %301 = vmatpush2.msra.mxu0 0.0
  %302 = vmatprep.subr.mxu0 0.0
  %303 = vmatpush2.msra.mxu0 0.0
  %304 = vmatprep.subr.mxu0 0.0
  %305 = vmatpush2.msra.mxu0 0.0
  %306 = vmatprep.subr.mxu0 0.0
  %307 = vmatpush2.msra.mxu0 0.0
  %308 = vmatprep.mubr.f32.mxu0 0.0
  %309 = vmatmul.mubr.f32.gmra.mxu0 %v227
  %v310 = vpop.f32.mrf.mxu0
  %v311 = vadd.f32 0.0, %v310
  %v312 = vpop.f32.mrf.mxu0
  %313 = vdwg.mxu0
  %v314 = vadd.f32 %v224, %v311
  %v315 = vld [vmem:[%s6] sm:$0x1]
  %v317 = vlaneseq
  %v318 = vshrl.u32 %v317, 7
  %v319 = vsub.s32 0, %v318
  %v320 = vrot.slane %v315, %v319
  %v322 = vadd.f32 %v314, %v320
  %v323 = vxor.u32 %v322, 2147483648
  %v324 = vmul.f32 %v323, 1.442695
  %v325 = vpow.pop %v324
  %v326 = vadd.f32 %v325, 1.0
  %v327 = vrcp.pop %v326
  %v328 = vmul.f32 1.0, %v327
  %329 = vst [vmem:[%s7] sm:$0x3] %v328
  // Predicated region
  $region30: #{early_forward.1} parent=0 // pred_check
    _
  $region31: #{early_forward.1} parent=0 // pred_check_branch
    %331 = sbr.rel (0) target = $region33
  $region32: #{early_forward.1} parent=0 // pred_region
    _
  $region33: #{early_forward.1} parent=0 // pred_fallthru
    _
  // Predicated region
  $region34: #{early_forward.1} parent=0 // pred_check
    _
  $region35: #{early_forward.1} parent=0 // pred_check_branch
    %333 = sbr.rel (0) target = $region37
  $region36: #{early_forward.1} parent=0 // pred_region
    _
  $region37: #{early_forward.1} parent=0 // pred_fallthru
    _

</llo_original>
